<compile_context>
chip_gen: v5e
topology: v5e:2x2
jax: 0.10.0
libtpu: 0.0.40
codegen_flags: <defaults>
</compile_context>

<pallas_src>
import jax
import jax.numpy as jnp
from jax.experimental import pallas as pl
from jax.experimental.pallas import tpu as pltpu


def _round_up(x, m):
    return (x + m - 1) // m * m


def _residual_linear_kernel_full(x_ref, w_ref, b_ref, o_ref):
    # x_ref: (tm, D)   w_ref: (D, D) pre-transposed so y = x @ w
    # b_ref: (1, D)    o_ref: (tm, D)
    x = x_ref[...]
    # bf16 MXU operands, f32 accumulation (cast is a no-op if already bf16).
    y = jnp.dot(x.astype(jnp.bfloat16), w_ref[...].astype(jnp.bfloat16),
                preferred_element_type=jnp.float32)
    o_ref[...] = (y + b_ref[...].astype(jnp.float32)
                  + x.astype(jnp.float32)).astype(o_ref.dtype)


def _residual_linear_kernel_ntiled(x_ref, w_ref, b_ref, xres_ref, o_ref):
    # x_ref:    (tm, D)  row tile (block index constant across the N axis)
    # w_ref:    (D, tn)  weight column tile
    # b_ref:    (1, tn)  bias tile
    # xres_ref: (tm, tn) residual tile of x matching the output columns
    # o_ref:    (tm, tn)
    y = jnp.dot(x_ref[...].astype(jnp.bfloat16),
                w_ref[...].astype(jnp.bfloat16),
                preferred_element_type=jnp.float32)
    o_ref[...] = (y + b_ref[...].astype(jnp.float32)
                  + xres_ref[...].astype(jnp.float32)).astype(o_ref.dtype)


def prepare_residual_linear_params(w, b):
    """One-time parameter prep: hoists the weight transpose out of the hot path.

    w: [D_out, D_in] (PyTorch nn.Linear convention), b: [D_out].
    Returns (w_t [D_in, D_out], b_2d [1, D_out]).
    """
    return jnp.asarray(w).T, jnp.asarray(b).reshape(1, -1)


def residual_linear(x, w_t, b2, *, tm=256, tn=None):
    """Fused Linear(x) + x  (Residual around nn.Linear(D, D)).

    x: [B, S, D]; w_t: [D, D] already transposed (see prepare_...); b2: [1, D].
    """
    B, S, D = x.shape
    assert w_t.shape == (D, D) and b2.shape == (1, D)
    M = B * S
    x2 = x.reshape(M, D)

    # ---- tile selection --------------------------------------------------
    # Rows: multiple of 8 (f32 sublane), capped by (padded) M.
    tm = max(8, tm - tm % 8)
    tm_eff = min(tm, _round_up(M, 8))
    n_m = pl.cdiv(M, tm_eff)
    m_pad = n_m * tm_eff
    if m_pad != M:
        # Correctness fix: pad the ragged tail instead of dropping it.
        x2 = jnp.pad(x2, ((0, m_pad - M), (0, 0)))

    # Weight columns: keep the whole D resident when it comfortably fits VMEM,
    # otherwise N-tile (important for v7x's smaller VMEM at large hidden sizes).
    if tn is None:
        tn = D if (D * D * x.dtype.itemsize <= (8 << 20) or D % 512 != 0) else 512
    assert D % tn == 0
    n_n = D // tn

    grid = (n_m, n_n)
    itemsize = x2.dtype.itemsize

    if n_n == 1:
        # Weight/bias block index never changes -> single-buffer them
        # (halves their VMEM footprint; no re-DMA happens anyway).
        kernel = _residual_linear_kernel_full
        in_specs = [
            pl.BlockSpec((tm_eff, D), lambda i, j: (i, 0)),
            pl.BlockSpec((D, D), lambda i, j: (0, 0),
                         pipeline_mode=pl.Buffered(1)),
            pl.BlockSpec((1, D), lambda i, j: (0, 0),
                         pipeline_mode=pl.Buffered(1)),
        ]
        operands = (x2, w_t, b2)
        vmem_est = (2 * tm_eff * D + D * D + D + 2 * tm_eff * D) * itemsize
    else:
        kernel = _residual_linear_kernel_ntiled
        in_specs = [
            pl.BlockSpec((tm_eff, D), lambda i, j: (i, 0)),    # x rows (matmul)
            pl.BlockSpec((D, tn), lambda i, j: (0, j)),        # weight columns
            pl.BlockSpec((1, tn), lambda i, j: (0, j)),        # bias columns
            pl.BlockSpec((tm_eff, tn), lambda i, j: (i, j)),   # x residual tile
        ]
        operands = (x2, w_t, b2, x2)
        vmem_est = (2 * tm_eff * D + 2 * D * tn + 2 * tn
                    + 2 * tm_eff * tn + 2 * tm_eff * tn) * itemsize

    out = pl.pallas_call(
        kernel,
        out_shape=jax.ShapeDtypeStruct((m_pad, D), x.dtype),
        grid_spec=pltpu.PrefetchScalarGridSpec(
            num_scalar_prefetch=0,
            grid=grid,
            in_specs=in_specs,
            out_specs=pl.BlockSpec((tm_eff, tn), lambda i, j: (i, j)),
        ),
        compiler_params=pltpu.CompilerParams(
            # M axis is embarrassingly parallel (shards across TCs on v7x).
            dimension_semantics=("parallel", "arbitrary"),
            vmem_limit_bytes=int(min(max(2 * vmem_est, 32 << 20), 64 << 20)),
        ),
    )(*operands)

    if m_pad != M:
        out = out[:M]
    return out.reshape(B, S, D)


if __name__ == "__main__":
    key = jax.random.PRNGKey(0)
    kx, kw, kb, kx2, kw2, kb2 = jax.random.split(key, 6)

    # --- case 1: small demo shape, whole weight resident (n_n == 1) -------
    B, S, D = 2, 8, 128
    x = jax.random.normal(kx, (B, S, D), dtype=jnp.float32)
    # deterministic synthetic weights for the wrapped nn.Linear(D, D)
    w = jax.random.normal(kw, (D, D), dtype=jnp.float32) * (1.0 / jnp.sqrt(D))
    b = jax.random.normal(kb, (D,), dtype=jnp.float32) * 0.01
    w_t, b2 = prepare_residual_linear_params(w, b)

    out = jax.block_until_ready(residual_linear(x, w_t, b2))
    ref = jnp.einsum("bsd,ed->bse", x, w) + b + x
    # bf16 MXU operands with f32 accumulation -> loosened tolerance.
    assert jnp.allclose(out, ref, atol=2e-2, rtol=2e-2), "mismatch (case 1)"

    # --- case 2: N-tiled weight + ragged M (exercises padding path) -------
    B2, S2, D2 = 2, 10, 256
    x_b = jax.random.normal(kx2, (B2, S2, D2), dtype=jnp.float32)
    w_b = jax.random.normal(kw2, (D2, D2), dtype=jnp.float32) * (1.0 / jnp.sqrt(D2))
    b_b = jax.random.normal(kb2, (D2,), dtype=jnp.float32) * 0.01
    w_bt, b_b2 = prepare_residual_linear_params(w_b, b_b)

    out_b = jax.block_until_ready(
        residual_linear(x_b, w_bt, b_b2, tm=16, tn=128))
    ref_b = jnp.einsum("bsd,ed->bse", x_b, w_b) + b_b + x_b
    assert jnp.allclose(out_b, ref_b, atol=2e-2, rtol=2e-2), "mismatch (case 2)"

    print("KERNEL_OK")
</pallas_src>

<mosaic_0001>
module attributes {stable_mosaic.version = 11 : i64} {
  func.func @_residual_linear_kernel_full(%arg0: i32, %arg1: i32, %arg2: memref<16x128xf32, #tpu.memory_space<vmem>>, %arg3: memref<128x128xf32, #tpu.memory_space<vmem>>, %arg4: memref<1x128xf32, #tpu.memory_space<vmem>>, %arg5: memref<16x128xf32, #tpu.memory_space<vmem>>) attributes {dimension_semantics = [#tpu.dimension_semantics<parallel>, #tpu.dimension_semantics<arbitrary>], iteration_bounds = array<i64: 1, 1>, scalar_prefetch = 0 : i64, scratch_operands = 0 : i64, tpu.core_type = #tpu.core_type<tc>, window_params = [{transform_indices = @transform_0, window_bounds = array<i64: 16, 128>}, {pipeline_mode = #tpu.pipeline_mode<synchronous>, transform_indices = @transform_1, window_bounds = array<i64: 128, 128>}, {pipeline_mode = #tpu.pipeline_mode<synchronous>, transform_indices = @transform_2, window_bounds = array<i64: 1, 128>}, {transform_indices = @transform_3, window_bounds = array<i64: 16, 128>}]} {
    %c0 = arith.constant 0 : index
    %c0_0 = arith.constant 0 : index
    %0 = vector.load %arg2[%c0, %c0_0] : memref<16x128xf32, #tpu.memory_space<vmem>>, vector<16x128xf32>
    %1 = arith.truncf %0 : vector<16x128xf32> to vector<16x128xbf16>
    %c0_1 = arith.constant 0 : index
    %c0_2 = arith.constant 0 : index
    %2 = vector.load %arg3[%c0_1, %c0_2] : memref<128x128xf32, #tpu.memory_space<vmem>>, vector<128x128xf32>
    %3 = arith.truncf %2 : vector<128x128xf32> to vector<128x128xbf16>
    %cst = arith.constant dense<0.000000e+00> : vector<16x128xf32>
    %4 = tpu.matmul %1, %3, %cst {dimension_numbers = #tpu.dot_dimension_numbers<[1], [0], [0], [1], [0, 0, 1, 1], [], []>} : vector<16x128xbf16>, vector<128x128xbf16>, vector<16x128xf32> -> vector<16x128xf32>
    %c0_3 = arith.constant 0 : index
    %c0_4 = arith.constant 0 : index
    %5 = vector.load %arg4[%c0_3, %c0_4] : memref<1x128xf32, #tpu.memory_space<vmem>>, vector<1x128xf32>
    %6 = vector.broadcast %5 : vector<1x128xf32> to vector<16x128xf32>
    %7 = arith.addf %4, %6 : vector<16x128xf32>
    %8 = arith.addf %7, %0 : vector<16x128xf32>
    %c0_5 = arith.constant 0 : index
    %c0_6 = arith.constant 0 : index
    %9 = vector.load %arg5[%c0_5, %c0_6] : memref<16x128xf32, #tpu.memory_space<vmem>>, vector<16x128xf32>
    tpu.vector_store %arg5[%c0_5, %c0_6], %8 {strides = array<i32>} : memref<16x128xf32, #tpu.memory_space<vmem>>, vector<16x128xf32>,
    return
  }
  func.func @transform_0(%arg0: i32, %arg1: i32) -> (i32, i32) {
    %c0_i32 = arith.constant 0 : i32
    %c0_i32_0 = arith.constant 0 : i32
    return %arg0, %c0_i32 : i32, i32
  }
  func.func @transform_1(%arg0: i32, %arg1: i32) -> (i32, i32) {
    %c0_i32 = arith.constant 0 : i32
    %c0_i32_0 = arith.constant 0 : i32
    %c0_i32_1 = arith.constant 0 : i32
    return %c0_i32, %c0_i32_0 : i32, i32
  }
  func.func @transform_2(%arg0: i32, %arg1: i32) -> (i32, i32) {
    %c0_i32 = arith.constant 0 : i32
    %c0_i32_0 = arith.constant 0 : i32
    %c0_i32_1 = arith.constant 0 : i32
    return %c0_i32, %c0_i32_0 : i32, i32
  }
  func.func @transform_3(%arg0: i32, %arg1: i32) -> (i32, i32) {
    %c0_i32 = arith.constant 0 : i32
    return %arg0, %arg1 : i32, i32
  }
}

</mosaic_0001>

<llo_original>
// kernel: tpu_custom_call.1
$region0: #{tpu_custom_call.1}
  #allocation0 [shape = 'u32[]', space=smem, size = 0x4, offset = 0x4, fixed_abs, tag = 'smem constant byte address 0x4 - core index']
  #allocation1 [shape = 'u32[72,128]{1,0:T(1,128)}', space=vmem, size = 0x9000, scoped, tag = 'internal scratch']
  %s0 = inlined_call_operand.hbm [shape: f32[16,128], index: 0, kind: input, shape index: {}]
  %s1 = inlined_call_operand.hbm [shape: f32[128,128], index: 1, kind: input, shape index: {}]
  %s2 = inlined_call_operand.vmem [shape: f32[1,128], index: 2, kind: input, shape index: {}]
  %s3 = inlined_call_operand.hbm [shape: f32[16,128], index: 3, kind: output, shape index: {}]
  %s4 = sld [smem:[#allocation0]]
  $region30: #{tpu_custom_call.1} parent=0
    _
  %s6 = ssub.s32 1, %s4
  %s7 = scalar_select 0, %s6, %s4
  $region1: #{tpu_custom_call.1} parent=0
    #allocation2 [shape = 'u8[8192]{0}', space=vmem, size = 0x2000, scoped, tag = 'input window, operand 0, single buffered']
    #allocation3 [shape = 's32[1]{0}', space=sflag, size = 0x4, scoped, tag = 'scoped memory for tpu_custom_call.1']
    #allocation4 [shape = 's32[1]{0}', space=sflag, size = 0x4, scoped, tag = 'scoped memory for tpu_custom_call.1']
    #allocation5 [shape = 'u8[65536]{0}', space=vmem, size = 0x10000, scoped, tag = 'input window, operand 1, single buffered']
    #allocation6 [shape = 's32[1]{0}', space=sflag, size = 0x4, scoped, tag = 'scoped memory for tpu_custom_call.1']
    #allocation7 [shape = 'u8[8192]{0}', space=vmem, size = 0x2000, scoped, tag = 'output window, operand 0, single buffered']
    %8 = vsyncpa [#allocation3], 0
    %9 = vsyncpa [#allocation6], 0
    %10 = vsyncpa [#allocation4], 0
    // Predicated region
    $region2: #{tpu_custom_call.1} parent=1 // pred_check
      _
    $region3: #{tpu_custom_call.1} parent=1 // pred_check_branch
      %12 = sbr.rel (0) target = $region5
    $region4: #{tpu_custom_call.1} parent=1 // pred_region
      %14 = vsyncadd [#allocation3], 0
      %s15 = sshll.u32 %s0, 4
      %s16 = int_to_ptr.hbm [resolvable:$true] %s15
      %s17 = sshll.u32 [#allocation2], 4
      %s18 = int_to_ptr.vmem [resolvable:$true] %s17
      %23 = dma.hbm_to_vmem [thread:$0]  %s16, 256, %s18, [#allocation3], 128, 128, 8
    $region5: #{tpu_custom_call.1} parent=1 // pred_fallthru
      _
    // Predicated region
    $region6: #{tpu_custom_call.1} parent=1 // pred_check
      _
    $region7: #{tpu_custom_call.1} parent=1 // pred_check_branch
      %25 = sbr.rel (0) target = $region9
    $region8: #{tpu_custom_call.1} parent=1 // pred_region
      %27 = vsyncadd [#allocation6], 0
      %s28 = sshll.u32 %s1, 4
      %s29 = int_to_ptr.hbm [resolvable:$true] %s28
      %s30 = sshll.u32 [#allocation5], 4
      %s31 = int_to_ptr.vmem [resolvable:$true] %s30
      %36 = dma.hbm_to_vmem [thread:$0]  %s29, 2048, %s31, [#allocation6], 128, 128, 8
    $region9: #{tpu_custom_call.1} parent=1 // pred_fallthru
      _
    // Predicated region
    $region10: #{tpu_custom_call.1} parent=1 // pred_check
      _
    $region11: #{tpu_custom_call.1} parent=1 // pred_check_branch
      %38 = sbr.rel (0) target = $region13
    $region12: #{tpu_custom_call.1} parent=1 // pred_region
      _
    $region13: #{tpu_custom_call.1} parent=1 // pred_fallthru
      _
    // Predicated region
    $region14: #{tpu_custom_call.1} parent=1 // pred_check
      _
    $region15: #{tpu_custom_call.1} parent=1 // pred_check_branch
      %40 = sbr.rel (0) target = $region17
    $region16: #{tpu_custom_call.1} parent=1 // pred_region
      %42 = dma.done [#allocation3], 256
    $region17: #{tpu_custom_call.1} parent=1 // pred_fallthru
      _
    // Predicated region
    $region18: #{tpu_custom_call.1} parent=1 // pred_check
      _
    $region19: #{tpu_custom_call.1} parent=1 // pred_check_branch
      %44 = sbr.rel (0) target = $region21
    $region20: #{tpu_custom_call.1} parent=1 // pred_region
      %46 = dma.done [#allocation6], 2048
    $region21: #{tpu_custom_call.1} parent=1 // pred_fallthru
      _
    %v47 = vld [vmem:[#allocation2] sm:$0xff]
    %v48 = vld [vmem:[#allocation2 + $0x8] sm:$0xff]
    %v49 = vpack.c.bf16 %v48, %v47
    %v50 = vld [vmem:[#allocation5] sm:$0xff]
    %v51 = vld [vmem:[#allocation5 + $0x8] sm:$0xff]
    %v52 = vld [vmem:[#allocation5 + $0x10] sm:$0xff]
    %v53 = vld [vmem:[#allocation5 + $0x18] sm:$0xff]
    %v54 = vld [vmem:[#allocation5 + $0x20] sm:$0xff]
    %v55 = vld [vmem:[#allocation5 + $0x28] sm:$0xff]
    %v56 = vld [vmem:[#allocation5 + $0x30] sm:$0xff]
    %v57 = vld [vmem:[#allocation5 + $0x38] sm:$0xff]
    %v58 = vld [vmem:[#allocation5 + $0x40] sm:$0xff]
    %v59 = vld [vmem:[#allocation5 + $0x48] sm:$0xff]
    %v60 = vld [vmem:[#allocation5 + $0x50] sm:$0xff]
    %v61 = vld [vmem:[#allocation5 + $0x58] sm:$0xff]
    %v62 = vld [vmem:[#allocation5 + $0x60] sm:$0xff]
    %v63 = vld [vmem:[#allocation5 + $0x68] sm:$0xff]
    %v64 = vld [vmem:[#allocation5 + $0x70] sm:$0xff]
    %v65 = vld [vmem:[#allocation5 + $0x78] sm:$0xff]
    %v66 = vpack.c.bf16 %v51, %v50
    %v67 = vpack.c.bf16 %v53, %v52
    %v68 = vpack.c.bf16 %v55, %v54
    %v69 = vpack.c.bf16 %v57, %v56
    %v70 = vpack.c.bf16 %v59, %v58
    %v71 = vpack.c.bf16 %v61, %v60
    %v72 = vpack.c.bf16 %v63, %v62
    %v73 = vpack.c.bf16 %v65, %v64
    %v74 = vld [vmem:[%s2] sm:$0x1]
    %v76 = vperm.slane %v74, 0
    %78 = vmatpush.bf16.msra.mxu0 %v73
    %79 = vmatpush.bf16.msra.mxu0 %v72
    %80 = vmatpush.bf16.msra.mxu0 %v71
    %81 = vmatpush.bf16.msra.mxu0 %v70
    %82 = vmatpush.bf16.msra.mxu0 %v69
    %83 = vmatpush.bf16.msra.mxu0 %v68
    %84 = vmatpush.bf16.msra.mxu0 %v67
    %85 = vmatpush.bf16.msra.mxu0 %v66
    %86 = vmatmul.bf16.gmra.mxu0 %v49
    %v87 = vpop.f32.mrf.mxu0
    %v88 = vadd.f32 %v76, %v87
    %v89 = vpop.f32.mrf.mxu0
    %v90 = vadd.f32 %v76, %v89
    %91 = vdwg.mxu0
    %v92 = vadd.f32 %v88, %v47
    %v93 = vadd.f32 %v90, %v48
    %94 = vst [vmem:[#allocation7] sm:$0xff] %v92
    %95 = vst [vmem:[#allocation7 + $0x8] sm:$0xff] %v93
    // Predicated region
    $region22: #{tpu_custom_call.1} parent=1 // pred_check
      _
    $region23: #{tpu_custom_call.1} parent=1 // pred_check_branch
      %97 = sbr.rel (0) target = $region25
    $region24: #{tpu_custom_call.1} parent=1 // pred_region
      %99 = vsyncadd [#allocation4], 0
      %s100 = sshll.u32 [#allocation7], 4
      %s101 = int_to_ptr.vmem [resolvable:$true] %s100
      %s102 = sshll.u32 %s3, 4
      %s103 = int_to_ptr.hbm [resolvable:$true] %s102
      %108 = dma.vmem_to_hbm [thread:$0]  %s101, 256, %s103, [#allocation4], 128, 128, 8
    $region25: #{tpu_custom_call.1} parent=1 // pred_fallthru
      _
    // Predicated region
    $region26: #{tpu_custom_call.1} parent=1 // pred_check
      _
    $region27: #{tpu_custom_call.1} parent=1 // pred_check_branch
      %110 = sbr.rel (0) target = $region29
    $region28: #{tpu_custom_call.1} parent=1 // pred_region
      %112 = dma.done [#allocation4], 256
    $region29: #{tpu_custom_call.1} parent=1 // pred_fallthru
      _
    %113 = vsyncpa [#allocation3], 1
    %114 = vsyncpa [#allocation6], 1
    %115 = vsyncpa [#allocation4], 1

</llo_original>
